<compile_context>
chip_gen: v7x
topology: tpu7x:2x2x1
jax: 0.10.0
libtpu: 0.0.40
codegen_flags: <defaults>
</compile_context>

<pallas_src>
import math
from functools import partial

import jax
import jax.numpy as jnp
from jax.experimental import pallas as pl
from jax.experimental.pallas import tpu as pltpu


def _round_up(x, m):
    return ((x + m - 1) // m) * m


# ---------------------------------------------------------------------------
# Pallas kernel: per-row self attention over the topk neighbor embeddings.
# ---------------------------------------------------------------------------
def _self_att_kernel(h_ref, a_ref, b_ref, o_ref, *, t_valid):
    # h_ref: (R, T, E)   a_ref: (E, E)   b_ref: (1, E)   o_ref: (R, E)
    h = h_ref[...]
    a = a_ref[...]
    b_row = b_ref[...]                                                 # (1, E)
    R, T, E = h.shape

    # logits = tanh(h @ a) . b
    # (R*T, E) @ (E, E) on the MXU; the (R, T, E) -> (R*T, E) flatten is a free
    # sublane reshape because T is a multiple of 8.
    h2 = h.reshape(R * T, E)
    s = jnp.tanh(jnp.dot(h2, a, preferred_element_type=jnp.float32))   # (R*T, E)

    # Width-1 second matmul replaced by a VPU multiply + lane reduction; keep
    # the logits as (R, T, 1) so the softmax and the weighted sum below stay
    # pure sublane reductions (no lane<->sublane relayout of `att`).
    e = jnp.sum(s * b_row, axis=-1, keepdims=True).reshape(R, T, 1)    # (R, T, 1)

    if t_valid is not None and t_valid != T:
        # Mask neighbor slots added only to pad topk up to a multiple of 8.
        tid = jax.lax.broadcasted_iota(jnp.int32, (1, T, 1), 1)
        e = jnp.where(tid < t_valid, e, -1e30)

    # Numerically-stable softmax over the T neighbors (sublane axis).
    m = jnp.max(e, axis=1, keepdims=True)                              # (R, 1, 1)
    p = jnp.exp(e - m)                                                 # (R, T, 1)
    denom = jnp.sum(p, axis=1, keepdims=True)                          # (R, 1, 1)
    att = p / denom                                                    # (R, T, 1)
    # (pl.reciprocal(denom, approx=True) would move this to the EUP slot but
    #  costs ~1e-3 relative error; exact division keeps parity with the ref.)

    # Weighted sum over neighbors; att lane-broadcasts over E, sublane reduce.
    out = jnp.sum(att * h, axis=1)                                     # (R, E)
    o_ref[...] = out.astype(o_ref.dtype)


def self_attention_pallas(h, a, b, *, rows_per_block=1024,
                          vmem_budget_bytes=12 << 20):
    """h: (N, T, E) float32, a: (E, E), b: (E, 1) -> (N, E)."""
    N, T, E = h.shape
    t_valid = T

    # Pad topk to a multiple of 8 sublanes (padded slots masked in-kernel).
    T_pad = _round_up(T, 8)
    if T_pad != T:
        h = jnp.pad(h, ((0, 0), (0, T_pad - T), (0, 0)))

    # Row-block sizing: as large as possible (amortizes the ~0.35us/step grid
    # overhead) while the double-buffered VMEM footprint stays within the
    # smallest default scoped VMEM limit (v5e: 16 MiB; v7x: 64 MiB physical).
    lane_e = _round_up(E, 128)                  # E < 128 pads lanes in VMEM
    bytes_per_row = (T_pad + 1) * lane_e * 4    # h block + out block, f32
    max_rows = max(8, vmem_budget_bytes // (2 * bytes_per_row))
    rows = min(rows_per_block, max_rows, _round_up(N, 8))
    rows = max(8, (rows // 8) * 8)

    N_pad = _round_up(N, rows)
    if N_pad != N:
        h = jnp.pad(h, ((0, N_pad - N), (0, 0), (0, 0)))

    b_row = b.reshape(1, E)
    grid = (N_pad // rows,)

    out = pl.pallas_call(
        partial(_self_att_kernel, t_valid=t_valid),
        out_shape=jax.ShapeDtypeStruct((N_pad, E), h.dtype),
        grid=grid,
        in_specs=[
            pl.BlockSpec((rows, T_pad, E), lambda i: (i, 0, 0)),
            pl.BlockSpec((E, E), lambda i: (0, 0)),
            pl.BlockSpec((1, E), lambda i: (0, 0)),
        ],
        out_specs=pl.BlockSpec((rows, E), lambda i: (i, 0)),
        compiler_params=pltpu.CompilerParams(
            # Row blocks are independent: lets the v7x megacore shard the grid.
            dimension_semantics=("parallel",),
        ),
    )(h, a, b_row)

    return out[:N] if N_pad != N else out


# ---------------------------------------------------------------------------
# ConceptNetEncoder forward (gathers in JAX glue, attention hot path in Pallas).
# ---------------------------------------------------------------------------
def conceptnet_encoder_forward(conceptnet_text_vec, params, *, rows_per_block=1024):
    """conceptnet_text_vec: (bs, L) int32 concept ids -> (bs, L, emb) float32."""
    emb_weight = params["conceptnet_emb"]      # (conceptnet_len, emb)
    neighbors_table = params["neighbors"]      # (conceptnet_len, topk) int32
    a = params["att_a"]                        # (emb, emb)
    b = params["att_b"]                        # (emb, 1)

    bs, L = conceptnet_text_vec.shape
    emb = emb_weight.shape[1]
    topk = neighbors_table.shape[1]

    # neighbors = self.neighbors[conceptnet_text_vec]  -> (bs, L, topk)
    neighbors = jnp.take(neighbors_table, conceptnet_text_vec, axis=0)
    # h = self.conceptnet_emb(neighbors)               -> (bs, L, topk, emb)
    # TODO(synk): fuse this gather into the Pallas kernel (scalar-prefetched
    # neighbor ids + manual DMA from an HBM-resident embedding table) to avoid
    # materializing h in HBM; with ~128-byte embedding rows a naive per-row DMA
    # fusion is descriptor-bound, so the gather stays in XLA for now.
    h = jnp.take(emb_weight, neighbors, axis=0)

    h_flat = h.reshape(bs * L, topk, emb)
    out_flat = self_attention_pallas(h_flat, a, b, rows_per_block=rows_per_block)
    return out_flat.reshape(bs, L, emb)


# Pure-JAX reference for verification.
def conceptnet_encoder_ref(conceptnet_text_vec, params):
    emb_weight = params["conceptnet_emb"]
    neighbors_table = params["neighbors"]
    a = params["att_a"]
    b = params["att_b"]
    neighbors = jnp.take(neighbors_table, conceptnet_text_vec, axis=0)
    h = jnp.take(emb_weight, neighbors, axis=0)                        # (bs, L, T, E)
    e = jnp.matmul(jnp.tanh(jnp.matmul(h, a, precision="highest")), b,
                   precision="highest")[..., 0]                        # (bs, L, T)
    att = jax.nn.softmax(e, axis=-1)
    return jnp.einsum("blt,blte->ble", att, h, precision="highest")


# ---------------------------------------------------------------------------
# Deterministic parameter initialization (mirrors the module's __init__).
# ---------------------------------------------------------------------------
def init_params(key, *, conceptnet_len, emb_size, topk):
    k_emb, k_a, k_b, k_nb = jax.random.split(key, 4)

    # nn.init.xavier_normal_ on Embedding(conceptnet_len, emb_size)
    std_emb = math.sqrt(2.0 / (conceptnet_len + emb_size))
    emb_weight = std_emb * jax.random.normal(
        k_emb, (conceptnet_len, emb_size), dtype=jnp.float32
    )

    # SelfAttentionLayer: a (emb, emb), b (emb, 1), xavier_uniform_ gain=1.414
    gain = 1.414
    bound_a = gain * math.sqrt(6.0 / (emb_size + emb_size))
    att_a = jax.random.uniform(
        k_a, (emb_size, emb_size), minval=-bound_a, maxval=bound_a, dtype=jnp.float32
    )
    bound_b = gain * math.sqrt(6.0 / (emb_size + 1))
    att_b = jax.random.uniform(
        k_b, (emb_size, 1), minval=-bound_b, maxval=bound_b, dtype=jnp.float32
    )

    # Synthetic neighbor table (stands in for the precomputed .npy table).
    neighbors = jax.random.randint(
        k_nb, (conceptnet_len, topk), minval=0, maxval=conceptnet_len, dtype=jnp.int32
    )

    return {
        "conceptnet_emb": emb_weight,
        "att_a": att_a,
        "att_b": att_b,
        "neighbors": neighbors,
    }


def _check(bs, L, emb, conceptnet_len, topk, seed):
    key = jax.random.PRNGKey(seed)
    k_params, k_ids = jax.random.split(key)
    params = init_params(
        k_params, conceptnet_len=conceptnet_len, emb_size=emb, topk=topk
    )
    ids = jax.random.randint(
        k_ids, (bs, L), minval=0, maxval=conceptnet_len, dtype=jnp.int32
    )
    out = jax.block_until_ready(conceptnet_encoder_forward(ids, params))
    ref = conceptnet_encoder_ref(ids, params)
    assert out.shape == (bs, L, emb), out.shape
    assert jnp.allclose(out, ref, atol=1e-5, rtol=1e-5), (
        "mismatch vs JAX reference (max abs err "
        f"{float(jnp.max(jnp.abs(out - ref))):.3e})"
    )


if __name__ == "__main__":
    # Primary small-shape check (topk and N already layout-friendly).
    _check(bs=2, L=8, emb=32, conceptnet_len=64, topk=8, seed=0)
    # Ragged shapes: exercises topk padding + in-kernel masking and N row padding.
    _check(bs=2, L=7, emb=32, conceptnet_len=64, topk=5, seed=0)
    print("KERNEL_OK")
</pallas_src>

<mosaic_0001>
module attributes {stable_mosaic.version = 11 : i64} {
  func.func @_self_att_kernel(%arg0: i32, %arg1: memref<16x8x32xf32, #tpu.memory_space<vmem>>, %arg2: memref<32x32xf32, #tpu.memory_space<vmem>>, %arg3: memref<1x32xf32, #tpu.memory_space<vmem>>, %arg4: memref<16x32xf32, #tpu.memory_space<vmem>>) attributes {dimension_semantics = [#tpu.dimension_semantics<parallel>], iteration_bounds = array<i64: 1>, scalar_prefetch = 0 : i64, scratch_operands = 0 : i64, tpu.core_type = #tpu.core_type<tc>, window_params = [{transform_indices = @transform_0, window_bounds = array<i64: 16, 8, 32>}, {pipeline_mode = #tpu.pipeline_mode<synchronous>, transform_indices = @transform_1, window_bounds = array<i64: 32, 32>}, {pipeline_mode = #tpu.pipeline_mode<synchronous>, transform_indices = @transform_2, window_bounds = array<i64: 1, 32>}, {transform_indices = @transform_3, window_bounds = array<i64: 16, 32>}]} {
    %c0 = arith.constant 0 : index
    %c0_0 = arith.constant 0 : index
    %c0_1 = arith.constant 0 : index
    %0 = vector.load %arg1[%c0, %c0_0, %c0_1] : memref<16x8x32xf32, #tpu.memory_space<vmem>>, vector<16x8x32xf32>
    %c0_2 = arith.constant 0 : index
    %c0_3 = arith.constant 0 : index
    %1 = vector.load %arg2[%c0_2, %c0_3] : memref<32x32xf32, #tpu.memory_space<vmem>>, vector<32x32xf32>
    %c0_4 = arith.constant 0 : index
    %c0_5 = arith.constant 0 : index
    %2 = vector.load %arg3[%c0_4, %c0_5] : memref<1x32xf32, #tpu.memory_space<vmem>>, vector<1x32xf32>
    %3 = vector.shape_cast %0 : vector<16x8x32xf32> to vector<128x32xf32>
    %cst = arith.constant dense<0.000000e+00> : vector<128x32xf32>
    %4 = tpu.matmul %3, %1, %cst {dimension_numbers = #tpu.dot_dimension_numbers<[1], [0], [0], [1], [0, 0, 1, 1], [], []>} : vector<128x32xf32>, vector<32x32xf32>, vector<128x32xf32> -> vector<128x32xf32>
    %5 = math.tanh %4 : vector<128x32xf32>
    %6 = vector.broadcast %2 : vector<1x32xf32> to vector<128x32xf32>
    %7 = arith.mulf %5, %6 : vector<128x32xf32>
    %cst_6 = arith.constant dense<0.000000e+00> : vector<128xf32>
    %8 = vector.multi_reduction <add>, %7, %cst_6 [1] : vector<128x32xf32> to vector<128xf32>
    %9 = vector.shape_cast %8 : vector<128xf32> to vector<128x1xf32>
    %10 = vector.shape_cast %9 : vector<128x1xf32> to vector<16x8x1xf32>
    %cst_7 = arith.constant dense<0xFF800000> : vector<16x1xf32>
    %11 = vector.multi_reduction <maximumf>, %10, %cst_7 [1] : vector<16x8x1xf32> to vector<16x1xf32>
    %12 = vector.shape_cast %11 : vector<16x1xf32> to vector<16x1x1xf32>
    %13 = vector.broadcast %12 : vector<16x1x1xf32> to vector<16x8x1xf32>
    %14 = arith.subf %10, %13 : vector<16x8x1xf32>
    %15 = math.exp %14 : vector<16x8x1xf32>
    %cst_8 = arith.constant dense<0.000000e+00> : vector<16x1xf32>
    %16 = vector.multi_reduction <add>, %15, %cst_8 [1] : vector<16x8x1xf32> to vector<16x1xf32>
    %17 = vector.shape_cast %16 : vector<16x1xf32> to vector<16x1x1xf32>
    %18 = vector.broadcast %17 : vector<16x1x1xf32> to vector<16x8x1xf32>
    %19 = arith.divf %15, %18 : vector<16x8x1xf32>
    %20 = vector.broadcast %19 : vector<16x8x1xf32> to vector<16x8x32xf32>
    %21 = arith.mulf %20, %0 : vector<16x8x32xf32>
    %cst_9 = arith.constant dense<0.000000e+00> : vector<16x32xf32>
    %22 = vector.multi_reduction <add>, %21, %cst_9 [1] : vector<16x8x32xf32> to vector<16x32xf32>
    %c0_10 = arith.constant 0 : index
    %c0_11 = arith.constant 0 : index
    %23 = vector.load %arg4[%c0_10, %c0_11] : memref<16x32xf32, #tpu.memory_space<vmem>>, vector<16x32xf32>
    tpu.vector_store %arg4[%c0_10, %c0_11], %22 {strides = array<i32>} : memref<16x32xf32, #tpu.memory_space<vmem>>, vector<16x32xf32>,
    return
  }
  func.func @transform_0(%arg0: i32) -> (i32, i32, i32) {
    %c0_i32 = arith.constant 0 : i32
    %c0_i32_0 = arith.constant 0 : i32
    %c0_i32_1 = arith.constant 0 : i32
    return %arg0, %c0_i32, %c0_i32_0 : i32, i32, i32
  }
  func.func @transform_1(%arg0: i32) -> (i32, i32) {
    %c0_i32 = arith.constant 0 : i32
    %c0_i32_0 = arith.constant 0 : i32
    %c0_i32_1 = arith.constant 0 : i32
    return %c0_i32, %c0_i32_0 : i32, i32
  }
  func.func @transform_2(%arg0: i32) -> (i32, i32) {
    %c0_i32 = arith.constant 0 : i32
    %c0_i32_0 = arith.constant 0 : i32
    %c0_i32_1 = arith.constant 0 : i32
    return %c0_i32, %c0_i32_0 : i32, i32
  }
  func.func @transform_3(%arg0: i32) -> (i32, i32) {
    %c0_i32 = arith.constant 0 : i32
    %c0_i32_0 = arith.constant 0 : i32
    return %arg0, %c0_i32 : i32, i32
  }
}

</mosaic_0001>

<llo_original>
// kernel: tpu_custom_call.1
$region0: #{tpu_custom_call.1}
  #allocation0 [shape = 'u32[]', space=smem, size = 0x4, offset = 0x4, fixed_abs, tag = 'smem constant byte address 0x4 - core index']
  #allocation1 [shape = 'u32[144,128]{1,0:T(1,128)}', space=vmem, size = 0x12000, scoped, tag = 'internal scratch']
  %s0 = inlined_call_operand.hbm [shape: f32[16,8,32], index: 0, kind: input, shape index: {}]
  %s1 = inlined_call_operand.hbm [shape: f32[32,32], index: 1, kind: input, shape index: {}]
  %s2 = inlined_call_operand.vmem [shape: f32[1,32], index: 2, kind: input, shape index: {}]
  %s3 = inlined_call_operand.hbm [shape: f32[16,32], index: 3, kind: output, shape index: {}]
  %s4 = sld [smem:[#allocation0]]
  $region30: #{tpu_custom_call.1} parent=0
    _
  %s6 = ssub.s32 1, %s4
  %s7 = scalar_select 0, %s6, %s4
  $region1: #{tpu_custom_call.1} parent=0
    #allocation2 [shape = 'u8[65536]{0}', space=vmem, size = 0x10000, scoped, tag = 'input window, operand 0, single buffered']
    #allocation3 [shape = 's32[1]{0}', space=sflag, size = 0x4, scoped, tag = 'scoped memory for tpu_custom_call.1']
    #allocation4 [shape = 's32[1]{0}', space=sflag, size = 0x4, scoped, tag = 'scoped memory for tpu_custom_call.1']
    #allocation5 [shape = 'u8[16384]{0}', space=vmem, size = 0x4000, scoped, tag = 'input window, operand 1, single buffered']
    #allocation6 [shape = 's32[1]{0}', space=sflag, size = 0x4, scoped, tag = 'scoped memory for tpu_custom_call.1']
    #allocation7 [shape = 'u8[8192]{0}', space=vmem, size = 0x2000, scoped, tag = 'output window, operand 0, single buffered']
    %8 = vsyncpa [#allocation3], 0
    %9 = vsyncpa [#allocation6], 0
    %10 = vsyncpa [#allocation4], 0
    // Predicated region
    $region2: #{tpu_custom_call.1} parent=1 // pred_check
      _
    $region3: #{tpu_custom_call.1} parent=1 // pred_check_branch
      %12 = sbr.rel (0) target = $region5
    $region4: #{tpu_custom_call.1} parent=1 // pred_region
      %s14 = ssub.s32 2048, 2048
      %15 = vsyncadd [#allocation3], %s14
      %s16 = sshll.u32 [#allocation2], 4
      %s17 = int_to_ptr.vmem [resolvable:$true] %s16
      %22 = dma.hbm_to_vmem [thread:$0]  %s0, 2048, %s17, [#allocation3], 128, 128, 8
    $region5: #{tpu_custom_call.1} parent=1 // pred_fallthru
      _
    // Predicated region
    $region6: #{tpu_custom_call.1} parent=1 // pred_check
      _
    $region7: #{tpu_custom_call.1} parent=1 // pred_check_branch
      %24 = sbr.rel (0) target = $region9
    $region8: #{tpu_custom_call.1} parent=1 // pred_region
      %s26 = ssub.s32 512, 512
      %27 = vsyncadd [#allocation6], %s26
      %s28 = sshll.u32 [#allocation5], 4
      %s29 = int_to_ptr.vmem [resolvable:$true] %s28
      %34 = dma.hbm_to_vmem [thread:$0]  %s1, 512, %s29, [#allocation6], 128, 128, 8
    $region9: #{tpu_custom_call.1} parent=1 // pred_fallthru
      _
    // Predicated region
    $region10: #{tpu_custom_call.1} parent=1 // pred_check
      _
    $region11: #{tpu_custom_call.1} parent=1 // pred_check_branch
      %36 = sbr.rel (0) target = $region13
    $region12: #{tpu_custom_call.1} parent=1 // pred_region
      _
    $region13: #{tpu_custom_call.1} parent=1 // pred_fallthru
      _
    // Predicated region
    $region14: #{tpu_custom_call.1} parent=1 // pred_check
      _
    $region15: #{tpu_custom_call.1} parent=1 // pred_check_branch
      %38 = sbr.rel (0) target = $region17
    $region16: #{tpu_custom_call.1} parent=1 // pred_region
      %39 = dma.done [#allocation3], 2048
    $region17: #{tpu_custom_call.1} parent=1 // pred_fallthru
      _
    // Predicated region
    $region18: #{tpu_custom_call.1} parent=1 // pred_check
      _
    $region19: #{tpu_custom_call.1} parent=1 // pred_check_branch
      %41 = sbr.rel (0) target = $region21
    $region20: #{tpu_custom_call.1} parent=1 // pred_region
      %42 = dma.done [#allocation6], 512
    $region21: #{tpu_custom_call.1} parent=1 // pred_fallthru
      _
    %v43 = vld [vmem:[#allocation2] sm:$0xff]
    %v44 = vld [vmem:[#allocation2 + $0x8] sm:$0xff]
    %v45 = vld [vmem:[#allocation2 + $0x10] sm:$0xff]
    %v46 = vld [vmem:[#allocation2 + $0x18] sm:$0xff]
    %v47 = vld [vmem:[#allocation2 + $0x20] sm:$0xff]
    %v48 = vld [vmem:[#allocation2 + $0x28] sm:$0xff]
    %v49 = vld [vmem:[#allocation2 + $0x30] sm:$0xff]
    %v50 = vld [vmem:[#allocation2 + $0x38] sm:$0xff]
    %v51 = vld [vmem:[#allocation2 + $0x40] sm:$0xff]
    %v52 = vld [vmem:[#allocation2 + $0x48] sm:$0xff]
    %v53 = vld [vmem:[#allocation2 + $0x50] sm:$0xff]
    %v54 = vld [vmem:[#allocation2 + $0x58] sm:$0xff]
    %v55 = vld [vmem:[#allocation2 + $0x60] sm:$0xff]
    %v56 = vld [vmem:[#allocation2 + $0x68] sm:$0xff]
    %v57 = vld [vmem:[#allocation2 + $0x70] sm:$0xff]
    %v58 = vld [vmem:[#allocation2 + $0x78] sm:$0xff]
    %v59 = vld [vmem:[#allocation5] sm:$0xff]
    %v60 = vld [vmem:[#allocation5 + $0x8] sm:$0xff]
    %v61 = vld [vmem:[#allocation5 + $0x10] sm:$0xff]
    %v62 = vld [vmem:[#allocation5 + $0x18] sm:$0xff]
    %v63 = vld [vmem:[%s2] sm:$0x1]
    %vm64 = vcmask 261120
    %v66 = vsel %vm64, %v43, 0
    %v69 = vsel %vm64, %v44, 0
    %v72 = vsel %vm64, %v45, 0
    %v75 = vsel %vm64, %v46, 0
    %v78 = vsel %vm64, %v47, 0
    %v81 = vsel %vm64, %v48, 0
    %v84 = vsel %vm64, %v49, 0
    %v87 = vsel %vm64, %v50, 0
    %v90 = vsel %vm64, %v51, 0
    %v93 = vsel %vm64, %v52, 0
    %v96 = vsel %vm64, %v53, 0
    %v99 = vsel %vm64, %v54, 0
    %v102 = vsel %vm64, %v55, 0
    %v105 = vsel %vm64, %v56, 0
    %v108 = vsel %vm64, %v57, 0
    %v111 = vsel %vm64, %v58, 0
    %113 = vmatprep.subr.mxu0 0.0
    %114 = vmatpush1.msra.mxu0 %v59
    %115 = vmatprep.subr.mxu0 0.0
    %116 = vmatpush1.msra.mxu0 %v60
    %117 = vmatprep.subr.mxu0 0.0
    %118 = vmatpush1.msra.mxu0 %v61
    %119 = vmatprep.subr.mxu0 0.0
    %120 = vmatpush1.msra.mxu0 %v62
    %121 = vmatprep.subr.mxu0 0.0
    %122 = vmatpush1.msra.mxu0 0.0
    %123 = vmatprep.subr.mxu0 0.0
    %124 = vmatpush1.msra.mxu0 0.0
    %125 = vmatprep.subr.mxu0 0.0
    %126 = vmatpush1.msra.mxu0 0.0
    %127 = vmatprep.subr.mxu0 0.0
    %128 = vmatpush1.msra.mxu0 0.0
    %129 = vmatprep.subr.mxu0 0.0
    %130 = vmatpush1.msra.mxu0 0.0
    %131 = vmatprep.subr.mxu0 0.0
    %132 = vmatpush1.msra.mxu0 0.0
    %133 = vmatprep.subr.mxu0 0.0
    %134 = vmatpush1.msra.mxu0 0.0
    %135 = vmatprep.subr.mxu0 0.0
    %136 = vmatpush1.msra.mxu0 0.0
    %137 = vmatprep.subr.mxu0 0.0
    %138 = vmatpush1.msra.mxu0 0.0
    %139 = vmatprep.subr.mxu0 0.0
    %140 = vmatpush1.msra.mxu0 0.0
    %141 = vmatprep.subr.mxu0 0.0
    %142 = vmatpush1.msra.mxu0 0.0
    %143 = vmatprep.subr.mxu0 0.0
    %144 = vmatpush1.msra.mxu0 0.0
    %145 = vmatprep.subr.mxu0 0.0
    %146 = vmatpush1.msra.mxu0 0.0
    %147 = vmatprep.subr.mxu0 0.0
    %148 = vmatpush1.msra.mxu0 0.0
    %149 = vmatprep.subr.mxu0 0.0
    %150 = vmatpush1.msra.mxu0 0.0
    %151 = vmatprep.subr.mxu0 0.0
    %152 = vmatpush1.msra.mxu0 0.0
    %153 = vmatprep.subr.mxu0 0.0
    %154 = vmatpush1.msra.mxu0 0.0
    %155 = vmatprep.subr.mxu0 0.0
    %156 = vmatpush1.msra.mxu0 0.0
    %157 = vmatprep.subr.mxu0 0.0
    %158 = vmatpush1.msra.mxu0 0.0
    %159 = vmatprep.subr.mxu0 0.0
    %160 = vmatpush1.msra.mxu0 0.0
    %161 = vmatprep.subr.mxu0 0.0
    %162 = vmatpush1.msra.mxu0 0.0
    %163 = vmatprep.subr.mxu0 0.0
    %164 = vmatpush1.msra.mxu0 0.0
    %165 = vmatprep.subr.mxu0 0.0
    %166 = vmatpush1.msra.mxu0 0.0
    %167 = vmatprep.subr.mxu0 0.0
    %168 = vmatpush1.msra.mxu0 0.0
    %169 = vmatprep.subr.mxu0 0.0
    %170 = vmatpush1.msra.mxu0 0.0
    %171 = vmatprep.subr.mxu0 0.0
    %172 = vmatpush1.msra.mxu0 0.0
    %173 = vmatprep.subr.mxu0 0.0
    %174 = vmatpush1.msra.mxu0 0.0
    %175 = vmatprep.subr.mxu0 0.0
    %176 = vmatpush1.msra.mxu0 0.0
    %177 = vmatprep.mubr.f32.mxu0 0.0
    %178 = vmatmul.mubr.f32.gmra.mrb[0].mxu0 %v66
    %v179 = vpop.f32.mrb[0].mxu0
    %v180 = vadd.f32 0.0, %v179
    %v181 = vpop.f32.mrb[0].mxu0
    %182 = vmatprep.mubr.f32.mxu0 0.0
    %183 = vmatmul.mubr.f32.gmra.mrb[0].mxu0 %v69
    %v184 = vpop.f32.mrb[0].mxu0
    %v185 = vadd.f32 0.0, %v184
    %v186 = vpop.f32.mrb[0].mxu0
    %187 = vmatprep.mubr.f32.mxu0 0.0
    %188 = vmatmul.mubr.f32.gmra.mrb[0].mxu0 %v72
    %v189 = vpop.f32.mrb[0].mxu0
    %v190 = vadd.f32 0.0, %v189
    %v191 = vpop.f32.mrb[0].mxu0
    %192 = vmatprep.mubr.f32.mxu0 0.0
    %193 = vmatmul.mubr.f32.gmra.mrb[0].mxu0 %v75
    %v194 = vpop.f32.mrb[0].mxu0
    %v195 = vadd.f32 0.0, %v194
    %v196 = vpop.f32.mrb[0].mxu0
    %197 = vmatprep.mubr.f32.mxu0 0.0
    %198 = vmatmul.mubr.f32.gmra.mrb[0].mxu0 %v78
    %v199 = vpop.f32.mrb[0].mxu0
    %v200 = vadd.f32 0.0, %v199
    %v201 = vpop.f32.mrb[0].mxu0
    %202 = vmatprep.mubr.f32.mxu0 0.0
    %203 = vmatmul.mubr.f32.gmra.mrb[0].mxu0 %v81
    %v204 = vpop.f32.mrb[0].mxu0
    %v205 = vadd.f32 0.0, %v204
    %v206 = vpop.f32.mrb[0].mxu0
    %207 = vmatprep.mubr.f32.mxu0 0.0
    %208 = vmatmul.mubr.f32.gmra.mrb[0].mxu0 %v84
    %v209 = vpop.f32.mrb[0].mxu0
    %v210 = vadd.f32 0.0, %v209
    %v211 = vpop.f32.mrb[0].mxu0
    %212 = vmatprep.mubr.f32.mxu0 0.0
    %213 = vmatmul.mubr.f32.gmra.mrb[0].mxu0 %v87
    %v214 = vpop.f32.mrb[0].mxu0
    %v215 = vadd.f32 0.0, %v214
    %v216 = vpop.f32.mrb[0].mxu0
    %217 = vmatprep.mubr.f32.mxu0 0.0
    %218 = vmatmul.mubr.f32.gmra.mrb[0].mxu0 %v90
    %v219 = vpop.f32.mrb[0].mxu0
    %v220 = vadd.f32 0.0, %v219
    %v221 = vpop.f32.mrb[0].mxu0
    %222 = vmatprep.mubr.f32.mxu0 0.0
    %223 = vmatmul.mubr.f32.gmra.mrb[0].mxu0 %v93
    %v224 = vpop.f32.mrb[0].mxu0
    %v225 = vadd.f32 0.0, %v224
    %v226 = vpop.f32.mrb[0].mxu0
    %227 = vmatprep.mubr.f32.mxu0 0.0
    %228 = vmatmul.mubr.f32.gmra.mrb[0].mxu0 %v96
    %v229 = vpop.f32.mrb[0].mxu0
    %v230 = vadd.f32 0.0, %v229
    %v231 = vpop.f32.mrb[0].mxu0
    %232 = vmatprep.mubr.f32.mxu0 0.0
    %233 = vmatmul.mubr.f32.gmra.mrb[0].mxu0 %v99
    %v234 = vpop.f32.mrb[0].mxu0
    %v235 = vadd.f32 0.0, %v234
    %v236 = vpop.f32.mrb[0].mxu0
    %237 = vmatprep.mubr.f32.mxu0 0.0
    %238 = vmatmul.mubr.f32.gmra.mrb[0].mxu0 %v102
    %v239 = vpop.f32.mrb[0].mxu0
    %v240 = vadd.f32 0.0, %v239
    %v241 = vpop.f32.mrb[0].mxu0
    %242 = vmatprep.mubr.f32.mxu0 0.0
    %243 = vmatmul.mubr.f32.gmra.mrb[0].mxu0 %v105
    %v244 = vpop.f32.mrb[0].mxu0
    %v245 = vadd.f32 0.0, %v244
    %v246 = vpop.f32.mrb[0].mxu0
    %247 = vmatprep.mubr.f32.mxu0 0.0
    %248 = vmatmul.mubr.f32.gmra.mrb[0].mxu0 %v108
    %v249 = vpop.f32.mrb[0].mxu0
    %v250 = vadd.f32 0.0, %v249
    %v251 = vpop.f32.mrb[0].mxu0
    %252 = vmatprep.mubr.f32.mxu0 0.0
    %253 = vmatmul.mubr.f32.gmra.mrb[0].mxu0 %v111
    %v254 = vpop.f32.mrb[0].mxu0
    %v255 = vadd.f32 0.0, %v254
    %v256 = vpop.f32.mrb[0].mxu0
    %257 = vdwg.mxu0
    %v258 = vtanh.pop %v180
    %v259 = vtanh.pop %v185
    %v260 = vtanh.pop %v190
    %v261 = vtanh.pop %v195
    %v262 = vtanh.pop %v200
    %v263 = vtanh.pop %v205
    %v264 = vtanh.pop %v210
    %v265 = vtanh.pop %v215
    %v266 = vtanh.pop %v220
    %v267 = vtanh.pop %v225
    %v268 = vtanh.pop %v230
    %v269 = vtanh.pop %v235
    %v270 = vtanh.pop %v240
    %v271 = vtanh.pop %v245
    %v272 = vtanh.pop %v250
    %v273 = vtanh.pop %v255
    %v275 = vlaneseq
    %v276 = vshrl.u32 %v275, 7
    %v277 = vsub.s32 0, %v276
    %v278 = vrot.slane %v63, %v277
    %v280 = vmul.f32 %v258, %v278
    %v281 = vmul.f32 %v259, %v278
    %v282 = vmul.f32 %v260, %v278
    %v283 = vmul.f32 %v261, %v278
    %v284 = vmul.f32 %v262, %v278
    %v285 = vmul.f32 %v263, %v278
    %v286 = vmul.f32 %v264, %v278
    %v287 = vmul.f32 %v265, %v278
    %v288 = vmul.f32 %v266, %v278
    %v289 = vmul.f32 %v267, %v278
    %v290 = vmul.f32 %v268, %v278
    %v291 = vmul.f32 %v269, %v278
    %v292 = vmul.f32 %v270, %v278
    %v293 = vmul.f32 %v271, %v278
    %v294 = vmul.f32 %v272, %v278
    %v295 = vmul.f32 %v273, %v278
    %v296 = vsel %vm64, %v280, 0.0
    %297 = vadd.xlane.f32.xlu0 %v296
    %v298 = vpop.xlane.xlu0 %297
    %v299 = vsel %vm64, %v281, 0.0
    %300 = vadd.xlane.f32.xlu0 %v299
    %v301 = vpop.xlane.xlu0 %300
    %v302 = vsel %vm64, %v282, 0.0
    %303 = vadd.xlane.f32.xlu0 %v302
    %v304 = vpop.xlane.xlu0 %303
    %v305 = vsel %vm64, %v283, 0.0
    %306 = vadd.xlane.f32.xlu0 %v305
    %v307 = vpop.xlane.xlu0 %306
    %v308 = vsel %vm64, %v284, 0.0
    %309 = vadd.xlane.f32.xlu0 %v308
    %v310 = vpop.xlane.xlu0 %309
    %v311 = vsel %vm64, %v285, 0.0
    %312 = vadd.xlane.f32.xlu0 %v311
    %v313 = vpop.xlane.xlu0 %312
    %v314 = vsel %vm64, %v286, 0.0
    %315 = vadd.xlane.f32.xlu0 %v314
    %v316 = vpop.xlane.xlu0 %315
    %v317 = vsel %vm64, %v287, 0.0
    %318 = vadd.xlane.f32.xlu0 %v317
    %v319 = vpop.xlane.xlu0 %318
    %v320 = vsel %vm64, %v288, 0.0
    %321 = vadd.xlane.f32.xlu0 %v320
    %v322 = vpop.xlane.xlu0 %321
    %v323 = vsel %vm64, %v289, 0.0
    %324 = vadd.xlane.f32.xlu0 %v323
    %v325 = vpop.xlane.xlu0 %324
    %v326 = vsel %vm64, %v290, 0.0
    %327 = vadd.xlane.f32.xlu0 %v326
    %v328 = vpop.xlane.xlu0 %327
    %v329 = vsel %vm64, %v291, 0.0
    %330 = vadd.xlane.f32.xlu0 %v329
    %v331 = vpop.xlane.xlu0 %330
    %v332 = vsel %vm64, %v292, 0.0
    %333 = vadd.xlane.f32.xlu0 %v332
    %v334 = vpop.xlane.xlu0 %333
    %v335 = vsel %vm64, %v293, 0.0
    %336 = vadd.xlane.f32.xlu0 %v335
    %v337 = vpop.xlane.xlu0 %336
    %v338 = vsel %vm64, %v294, 0.0
    %339 = vadd.xlane.f32.xlu0 %v338
    %v340 = vpop.xlane.xlu0 %339
    %v341 = vsel %vm64, %v295, 0.0
    %342 = vadd.xlane.f32.xlu0 %v341
    %v343 = vpop.xlane.xlu0 %342
    %v344 = vrot.slane %v298, 4
    %v345 = vmax.f32 %v298, %v344
    %v346 = vrot.slane %v345, 2
    %v347 = vmax.f32 %v345, %v346
    %v348 = vrot.slane %v347, 1
    %v349 = vmax.f32 %v347, %v348
    %v350 = vrot.slane %v301, 4
    %v351 = vmax.f32 %v301, %v350
    %v352 = vrot.slane %v351, 2
    %v353 = vmax.f32 %v351, %v352
    %v354 = vrot.slane %v353, 1
    %v355 = vmax.f32 %v353, %v354
    %v356 = vrot.slane %v304, 4
    %v357 = vmax.f32 %v304, %v356
    %v358 = vrot.slane %v357, 2
    %v359 = vmax.f32 %v357, %v358
    %v360 = vrot.slane %v359, 1
    %v361 = vmax.f32 %v359, %v360
    %v362 = vrot.slane %v307, 4
    %v363 = vmax.f32 %v307, %v362
    %v364 = vrot.slane %v363, 2
    %v365 = vmax.f32 %v363, %v364
    %v366 = vrot.slane %v365, 1
    %v367 = vmax.f32 %v365, %v366
    %v368 = vrot.slane %v310, 4
    %v369 = vmax.f32 %v310, %v368
    %v370 = vrot.slane %v369, 2
    %v371 = vmax.f32 %v369, %v370
    %v372 = vrot.slane %v371, 1
    %v373 = vmax.f32 %v371, %v372
    %v374 = vrot.slane %v313, 4
    %v375 = vmax.f32 %v313, %v374
    %v376 = vrot.slane %v375, 2
    %v377 = vmax.f32 %v375, %v376
    %v378 = vrot.slane %v377, 1
    %v379 = vmax.f32 %v377, %v378
    %v380 = vrot.slane %v316, 4
    %v381 = vmax.f32 %v316, %v380
    %v382 = vrot.slane %v381, 2
    %v383 = vmax.f32 %v381, %v382
    %v384 = vrot.slane %v383, 1
    %v385 = vmax.f32 %v383, %v384
    %v386 = vrot.slane %v319, 4
    %v387 = vmax.f32 %v319, %v386
    %v388 = vrot.slane %v387, 2
    %v389 = vmax.f32 %v387, %v388
    %v390 = vrot.slane %v389, 1
    %v391 = vmax.f32 %v389, %v390
    %v392 = vrot.slane %v322, 4
    %v393 = vmax.f32 %v322, %v392
    %v394 = vrot.slane %v393, 2
    %v395 = vmax.f32 %v393, %v394
    %v396 = vrot.slane %v395, 1
    %v397 = vmax.f32 %v395, %v396
    %v398 = vrot.slane %v325, 4
    %v399 = vmax.f32 %v325, %v398
    %v400 = vrot.slane %v399, 2
    %v401 = vmax.f32 %v399, %v400
    %v402 = vrot.slane %v401, 1
    %v403 = vmax.f32 %v401, %v402
    %v404 = vrot.slane %v328, 4
    %v405 = vmax.f32 %v328, %v404
    %v406 = vrot.slane %v405, 2
    %v407 = vmax.f32 %v405, %v406
    %v408 = vrot.slane %v407, 1
    %v409 = vmax.f32 %v407, %v408
    %v410 = vrot.slane %v331, 4
    %v411 = vmax.f32 %v331, %v410
    %v412 = vrot.slane %v411, 2
    %v413 = vmax.f32 %v411, %v412
    %v414 = vrot.slane %v413, 1
    %v415 = vmax.f32 %v413, %v414
    %v416 = vrot.slane %v334, 4
    %v417 = vmax.f32 %v334, %v416
    %v418 = vrot.slane %v417, 2
    %v419 = vmax.f32 %v417, %v418
    %v420 = vrot.slane %v419, 1
    %v421 = vmax.f32 %v419, %v420
    %v422 = vrot.slane %v337, 4
    %v423 = vmax.f32 %v337, %v422
    %v424 = vrot.slane %v423, 2
    %v425 = vmax.f32 %v423, %v424
    %v426 = vrot.slane %v425, 1
    %v427 = vmax.f32 %v425, %v426
    %v428 = vrot.slane %v340, 4
    %v429 = vmax.f32 %v340, %v428
    %v430 = vrot.slane %v429, 2
    %v431 = vmax.f32 %v429, %v430
    %v432 = vrot.slane %v431, 1
    %v433 = vmax.f32 %v431, %v432
    %v434 = vrot.slane %v343, 4
    %v435 = vmax.f32 %v343, %v434
    %v436 = vrot.slane %v435, 2
    %v437 = vmax.f32 %v435, %v436
    %v438 = vrot.slane %v437, 1
    %v439 = vmax.f32 %v437, %v438
    %v440 = vsub.f32 %v298, %v349
    %v441 = vsub.f32 %v301, %v355
    %v442 = vsub.f32 %v304, %v361
    %v443 = vsub.f32 %v307, %v367
    %v444 = vsub.f32 %v310, %v373
    %v445 = vsub.f32 %v313, %v379
    %v446 = vsub.f32 %v316, %v385
    %v447 = vsub.f32 %v319, %v391
    %v448 = vsub.f32 %v322, %v397
    %v449 = vsub.f32 %v325, %v403
    %v450 = vsub.f32 %v328, %v409
    %v451 = vsub.f32 %v331, %v415
    %v452 = vsub.f32 %v334, %v421
    %v453 = vsub.f32 %v337, %v427
    %v454 = vsub.f32 %v340, %v433
    %v455 = vsub.f32 %v343, %v439
    %v456 = vmul.f32 %v440, 1.442695
    %v457 = vpow.pop %v456
    %v458 = vmul.f32 %v441, 1.442695
    %v459 = vpow.pop %v458
    %v460 = vmul.f32 %v442, 1.442695
    %v461 = vpow.pop %v460
    %v462 = vmul.f32 %v443, 1.442695
    %v463 = vpow.pop %v462
    %v464 = vmul.f32 %v444, 1.442695
    %v465 = vpow.pop %v464
    %v466 = vmul.f32 %v445, 1.442695
    %v467 = vpow.pop %v466
    %v468 = vmul.f32 %v446, 1.442695
    %v469 = vpow.pop %v468
    %v470 = vmul.f32 %v447, 1.442695
    %v471 = vpow.pop %v470
    %v472 = vmul.f32 %v448, 1.442695
    %v473 = vpow.pop %v472
    %v474 = vmul.f32 %v449, 1.442695
    %v475 = vpow.pop %v474
    %v476 = vmul.f32 %v450, 1.442695
    %v477 = vpow.pop %v476
    %v478 = vmul.f32 %v451, 1.442695
    %v479 = vpow.pop %v478
    %v480 = vmul.f32 %v452, 1.442695
    %v481 = vpow.pop %v480
    %v482 = vmul.f32 %v453, 1.442695
    %v483 = vpow.pop %v482
    %v484 = vmul.f32 %v454, 1.442695
    %v485 = vpow.pop %v484
    %v486 = vmul.f32 %v455, 1.442695
    %v487 = vpow.pop %v486
    %v488 = vrot.slane %v457, 4
    %v489 = vadd.f32 %v457, %v488
    %v490 = vrot.slane %v489, 2
    %v491 = vadd.f32 %v489, %v490
    %v492 = vrot.slane %v491, 1
    %v493 = vadd.f32 %v491, %v492
    %v494 = vrot.slane %v459, 4
    %v495 = vadd.f32 %v459, %v494
    %v496 = vrot.slane %v495, 2
    %v497 = vadd.f32 %v495, %v496
    %v498 = vrot.slane %v497, 1
    %v499 = vadd.f32 %v497, %v498
    %v500 = vrot.slane %v461, 4
    %v501 = vadd.f32 %v461, %v500
    %v502 = vrot.slane %v501, 2
    %v503 = vadd.f32 %v501, %v502
    %v504 = vrot.slane %v503, 1
    %v505 = vadd.f32 %v503, %v504
    %v506 = vrot.slane %v463, 4
    %v507 = vadd.f32 %v463, %v506
    %v508 = vrot.slane %v507, 2
    %v509 = vadd.f32 %v507, %v508
    %v510 = vrot.slane %v509, 1
    %v511 = vadd.f32 %v509, %v510
    %v512 = vrot.slane %v465, 4
    %v513 = vadd.f32 %v465, %v512
    %v514 = vrot.slane %v513, 2
    %v515 = vadd.f32 %v513, %v514
    %v516 = vrot.slane %v515, 1
    %v517 = vadd.f32 %v515, %v516
    %v518 = vrot.slane %v467, 4
    %v519 = vadd.f32 %v467, %v518
    %v520 = vrot.slane %v519, 2
    %v521 = vadd.f32 %v519, %v520
    %v522 = vrot.slane %v521, 1
    %v523 = vadd.f32 %v521, %v522
    %v524 = vrot.slane %v469, 4
    %v525 = vadd.f32 %v469, %v524
    %v526 = vrot.slane %v525, 2
    %v527 = vadd.f32 %v525, %v526
    %v528 = vrot.slane %v527, 1
    %v529 = vadd.f32 %v527, %v528
    %v530 = vrot.slane %v471, 4
    %v531 = vadd.f32 %v471, %v530
    %v532 = vrot.slane %v531, 2
    %v533 = vadd.f32 %v531, %v532
    %v534 = vrot.slane %v533, 1
    %v535 = vadd.f32 %v533, %v534
    %v536 = vrot.slane %v473, 4
    %v537 = vadd.f32 %v473, %v536
    %v538 = vrot.slane %v537, 2
    %v539 = vadd.f32 %v537, %v538
    %v540 = vrot.slane %v539, 1
    %v541 = vadd.f32 %v539, %v540
    %v542 = vrot.slane %v475, 4
    %v543 = vadd.f32 %v475, %v542
    %v544 = vrot.slane %v543, 2
    %v545 = vadd.f32 %v543, %v544
    %v546 = vrot.slane %v545, 1
    %v547 = vadd.f32 %v545, %v546
    %v548 = vrot.slane %v477, 4
    %v549 = vadd.f32 %v477, %v548
    %v550 = vrot.slane %v549, 2
    %v551 = vadd.f32 %v549, %v550
    %v552 = vrot.slane %v551, 1
    %v553 = vadd.f32 %v551, %v552
    %v554 = vrot.slane %v479, 4
    %v555 = vadd.f32 %v479, %v554
    %v556 = vrot.slane %v555, 2
    %v557 = vadd.f32 %v555, %v556
    %v558 = vrot.slane %v557, 1
    %v559 = vadd.f32 %v557, %v558
    %v560 = vrot.slane %v481, 4
    %v561 = vadd.f32 %v481, %v560
    %v562 = vrot.slane %v561, 2
    %v563 = vadd.f32 %v561, %v562
    %v564 = vrot.slane %v563, 1
    %v565 = vadd.f32 %v563, %v564
    %v566 = vrot.slane %v483, 4
    %v567 = vadd.f32 %v483, %v566
    %v568 = vrot.slane %v567, 2
    %v569 = vadd.f32 %v567, %v568
    %v570 = vrot.slane %v569, 1
    %v571 = vadd.f32 %v569, %v570
    %v572 = vrot.slane %v485, 4
    %v573 = vadd.f32 %v485, %v572
    %v574 = vrot.slane %v573, 2
    %v575 = vadd.f32 %v573, %v574
    %v576 = vrot.slane %v575, 1
    %v577 = vadd.f32 %v575, %v576
    %v578 = vrot.slane %v487, 4
    %v579 = vadd.f32 %v487, %v578
    %v580 = vrot.slane %v579, 2
    %v581 = vadd.f32 %v579, %v580
    %v582 = vrot.slane %v581, 1
    %v583 = vadd.f32 %v581, %v582
    %v584 = vrcp.pop %v493
    %v585 = vmul.f32 %v457, %v584
    %v586 = vrcp.pop %v499
    %v587 = vmul.f32 %v459, %v586
    %v588 = vrcp.pop %v505
    %v589 = vmul.f32 %v461, %v588
    %v590 = vrcp.pop %v511
    %v591 = vmul.f32 %v463, %v590
    %v592 = vrcp.pop %v517
    %v593 = vmul.f32 %v465, %v592
    %v594 = vrcp.pop %v523
    %v595 = vmul.f32 %v467, %v594
    %v596 = vrcp.pop %v529
    %v597 = vmul.f32 %v469, %v596
    %v598 = vrcp.pop %v535
    %v599 = vmul.f32 %v471, %v598
    %v600 = vrcp.pop %v541
    %v601 = vmul.f32 %v473, %v600
    %v602 = vrcp.pop %v547
    %v603 = vmul.f32 %v475, %v602
    %v604 = vrcp.pop %v553
    %v605 = vmul.f32 %v477, %v604
    %v606 = vrcp.pop %v559
    %v607 = vmul.f32 %v479, %v606
    %v608 = vrcp.pop %v565
    %v609 = vmul.f32 %v481, %v608
    %v610 = vrcp.pop %v571
    %v611 = vmul.f32 %v483, %v610
    %v612 = vrcp.pop %v577
    %v613 = vmul.f32 %v485, %v612
    %v614 = vrcp.pop %v583
    %v615 = vmul.f32 %v487, %v614
    %v616 = vmul.f32 %v585, %v43
    %v617 = vmul.f32 %v587, %v44
    %v618 = vmul.f32 %v589, %v45
    %v619 = vmul.f32 %v591, %v46
    %v620 = vmul.f32 %v593, %v47
    %v621 = vmul.f32 %v595, %v48
    %v622 = vmul.f32 %v597, %v49
    %v623 = vmul.f32 %v599, %v50
    %v624 = vmul.f32 %v601, %v51
    %v625 = vmul.f32 %v603, %v52
    %v626 = vmul.f32 %v605, %v53
    %v627 = vmul.f32 %v607, %v54
    %v628 = vmul.f32 %v609, %v55
    %v629 = vmul.f32 %v611, %v56
    %v630 = vmul.f32 %v613, %v57
    %v631 = vmul.f32 %v615, %v58
    %v632 = vsel %vm64, %v616, 0.0
    %v633 = vrot.slane %v632, 4
    %v634 = vadd.f32 %v632, %v633
    %v635 = vrot.slane %v634, 2
    %v636 = vadd.f32 %v634, %v635
    %v637 = vrot.slane %v636, 1
    %v638 = vadd.f32 %v636, %v637
    %v639 = vsel %vm64, %v617, 0.0
    %v640 = vrot.slane %v639, 4
    %v641 = vadd.f32 %v639, %v640
    %v642 = vrot.slane %v641, 2
    %v643 = vadd.f32 %v641, %v642
    %v644 = vrot.slane %v643, 1
    %v645 = vadd.f32 %v643, %v644
    %v646 = vsel %vm64, %v618, 0.0
    %v647 = vrot.slane %v646, 4
    %v648 = vadd.f32 %v646, %v647
    %v649 = vrot.slane %v648, 2
    %v650 = vadd.f32 %v648, %v649
    %v651 = vrot.slane %v650, 1
    %v652 = vadd.f32 %v650, %v651
    %v653 = vsel %vm64, %v619, 0.0
    %v654 = vrot.slane %v653, 4
    %v655 = vadd.f32 %v653, %v654
    %v656 = vrot.slane %v655, 2
    %v657 = vadd.f32 %v655, %v656
    %v658 = vrot.slane %v657, 1
    %v659 = vadd.f32 %v657, %v658
    %v660 = vsel %vm64, %v620, 0.0
    %v661 = vrot.slane %v660, 4
    %v662 = vadd.f32 %v660, %v661
    %v663 = vrot.slane %v662, 2
    %v664 = vadd.f32 %v662, %v663
    %v665 = vrot.slane %v664, 1
    %v666 = vadd.f32 %v664, %v665
    %v667 = vsel %vm64, %v621, 0.0
    %v668 = vrot.slane %v667, 4
    %v669 = vadd.f32 %v667, %v668
    %v670 = vrot.slane %v669, 2
    %v671 = vadd.f32 %v669, %v670
    %v672 = vrot.slane %v671, 1
    %v673 = vadd.f32 %v671, %v672
    %v674 = vsel %vm64, %v622, 0.0
    %v675 = vrot.slane %v674, 4
    %v676 = vadd.f32 %v674, %v675
    %v677 = vrot.slane %v676, 2
    %v678 = vadd.f32 %v676, %v677
    %v679 = vrot.slane %v678, 1
    %v680 = vadd.f32 %v678, %v679
    %v681 = vsel %vm64, %v623, 0.0
    %v682 = vrot.slane %v681, 4
    %v683 = vadd.f32 %v681, %v682
    %v684 = vrot.slane %v683, 2
    %v685 = vadd.f32 %v683, %v684
    %v686 = vrot.slane %v685, 1
    %v687 = vadd.f32 %v685, %v686
    %v688 = vsel %vm64, %v624, 0.0
    %v689 = vrot.slane %v688, 4
    %v690 = vadd.f32 %v688, %v689
    %v691 = vrot.slane %v690, 2
    %v692 = vadd.f32 %v690, %v691
    %v693 = vrot.slane %v692, 1
    %v694 = vadd.f32 %v692, %v693
    %v695 = vsel %vm64, %v625, 0.0
    %v696 = vrot.slane %v695, 4
    %v697 = vadd.f32 %v695, %v696
    %v698 = vrot.slane %v697, 2
    %v699 = vadd.f32 %v697, %v698
    %v700 = vrot.slane %v699, 1
    %v701 = vadd.f32 %v699, %v700
    %v702 = vsel %vm64, %v626, 0.0
    %v703 = vrot.slane %v702, 4
    %v704 = vadd.f32 %v702, %v703
    %v705 = vrot.slane %v704, 2
    %v706 = vadd.f32 %v704, %v705
    %v707 = vrot.slane %v706, 1
    %v708 = vadd.f32 %v706, %v707
    %v709 = vsel %vm64, %v627, 0.0
    %v710 = vrot.slane %v709, 4
    %v711 = vadd.f32 %v709, %v710
    %v712 = vrot.slane %v711, 2
    %v713 = vadd.f32 %v711, %v712
    %v714 = vrot.slane %v713, 1
    %v715 = vadd.f32 %v713, %v714
    %v716 = vsel %vm64, %v628, 0.0
    %v717 = vrot.slane %v716, 4
    %v718 = vadd.f32 %v716, %v717
    %v719 = vrot.slane %v718, 2
    %v720 = vadd.f32 %v718, %v719
    %v721 = vrot.slane %v720, 1
    %v722 = vadd.f32 %v720, %v721
    %v723 = vsel %vm64, %v629, 0.0
    %v724 = vrot.slane %v723, 4
    %v725 = vadd.f32 %v723, %v724
    %v726 = vrot.slane %v725, 2
    %v727 = vadd.f32 %v725, %v726
    %v728 = vrot.slane %v727, 1
    %v729 = vadd.f32 %v727, %v728
    %v730 = vsel %vm64, %v630, 0.0
    %v731 = vrot.slane %v730, 4
    %v732 = vadd.f32 %v730, %v731
    %v733 = vrot.slane %v732, 2
    %v734 = vadd.f32 %v732, %v733
    %v735 = vrot.slane %v734, 1
    %v736 = vadd.f32 %v734, %v735
    %v737 = vsel %vm64, %v631, 0.0
    %v738 = vrot.slane %v737, 4
    %v739 = vadd.f32 %v737, %v738
    %v740 = vrot.slane %v739, 2
    %v741 = vadd.f32 %v739, %v740
    %v742 = vrot.slane %v741, 1
    %v743 = vadd.f32 %v741, %v742
    %vm760 = vcmask 1041409
    %v761 = vsel %vm760, %v645, %v638
    %vm762 = vcmask 1042434
    %v763 = vsel %vm762, %v652, %v761
    %vm764 = vcmask 1043459
    %v765 = vsel %vm764, %v659, %v763
    %vm766 = vcmask 1044484
    %v767 = vsel %vm766, %v666, %v765
    %vm768 = vcmask 1045509
    %v769 = vsel %vm768, %v673, %v767
    %vm770 = vcmask 1046534
    %v771 = vsel %vm770, %v680, %v769
    %vm772 = vcmask 1047559
    %v773 = vsel %vm772, %v687, %v771
    %v774 = vsel %vm760, %v701, %v694
    %v775 = vsel %vm762, %v708, %v774
    %v776 = vsel %vm764, %v715, %v775
    %v777 = vsel %vm766, %v722, %v776
    %v778 = vsel %vm768, %v729, %v777
    %v779 = vsel %vm770, %v736, %v778
    %v780 = vsel %vm772, %v743, %v779
    %783 = vst.msk [vmem:[#allocation7] sm:$0xff] %vm64, %v773
    %784 = vst.msk [vmem:[#allocation7 + $0x8] sm:$0xff] %vm64, %v780
    // Predicated region
    $region22: #{tpu_custom_call.1} parent=1 // pred_check
      _
    $region23: #{tpu_custom_call.1} parent=1 // pred_check_branch
      %786 = sbr.rel (0) target = $region25
    $region24: #{tpu_custom_call.1} parent=1 // pred_region
      %s788 = ssub.s32 256, 256
      %789 = vsyncadd [#allocation4], %s788
      %s790 = sshll.u32 [#allocation7], 4
      %s791 = int_to_ptr.vmem [resolvable:$true] %s790
      %796 = dma.vmem_to_hbm [thread:$0]  %s791, 256, %s3, [#allocation4], 128, 128, 8
    $region25: #{tpu_custom_call.1} parent=1 // pred_fallthru
      _
    // Predicated region
    $region26: #{tpu_custom_call.1} parent=1 // pred_check
      _
    $region27: #{tpu_custom_call.1} parent=1 // pred_check_branch
      %798 = sbr.rel (0) target = $region29
    $region28: #{tpu_custom_call.1} parent=1 // pred_region
      %799 = dma.done [#allocation4], 256
    $region29: #{tpu_custom_call.1} parent=1 // pred_fallthru
      _
    %800 = vsyncpa [#allocation3], 1
    %801 = vsyncpa [#allocation6], 1
    %802 = vsyncpa [#allocation4], 1

</llo_original>
